<compile_context>
chip_gen: v7x
topology: tpu7x:2x2x1
jax: 0.10.0
libtpu: 0.0.40
codegen_flags: <defaults>
</compile_context>

<pallas_src>
import jax
import jax.numpy as jnp
from jax.experimental import pallas as pl
from jax.experimental.pallas import tpu as pltpu

_C = 256        # channel count fixed by the module (view(-1, 256, 1, 1))
_TILE_N = 1024  # rows per block: multiple of 8, ~1 MiB per f32 buffer


def _identity_copy_kernel(x_ref, o_ref):
    # Identity copy of one (tile_n, 256) block; reshape semantics are
    # metadata-only and handled in the wrapper.
    o_ref[...] = x_ref[...]


@jax.jit
def unsqueeze_forward(x: jax.Array) -> jax.Array:
    """Equivalent of Unsqueeze.forward: x.view(-1, 256, 1, 1)."""
    total = x.size
    assert total % _C == 0, "input size must be divisible by 256"
    n = total // _C

    # Canonical (N, 256) layout — metadata-only, no data movement.
    x2d = jnp.reshape(x, (n, _C))

    # Small N: one full-extent block (satisfies the (8,128) rule via
    # "block == full array dims").  Large N: 1024-row tiles so the copy is
    # pipelined (DMA-in / copy / DMA-out overlap) and VMEM use stays tiny
    # (well under v7x's 32 MiB scoped limit even with double-buffering).
    tile_n = n if n <= _TILE_N else _TILE_N
    grid = (pl.cdiv(n, tile_n),)

    out2d = pl.pallas_call(
        _identity_copy_kernel,
        out_shape=jax.ShapeDtypeStruct((n, _C), x2d.dtype),
        grid=grid,
        in_specs=[pl.BlockSpec((tile_n, _C), lambda i: (i, 0))],
        out_specs=pl.BlockSpec((tile_n, _C), lambda i: (i, 0)),
        # Output aliases the input buffer: no second HBM allocation for what
        # is semantically an identity op.
        input_output_aliases={0: 0},
        compiler_params=pltpu.CompilerParams(
            # N axis is embarrassingly parallel -> megacore sharding on v7x;
            # harmless no-op on single-TC v5e/v6e.
            dimension_semantics=("parallel",),
        ),
    )(x2d)

    # NCHW output with H = W = 1 — metadata-only reshape.
    return jnp.reshape(out2d, (n, _C, 1, 1))


if __name__ == "__main__":
    key = jax.random.PRNGKey(0)
    # Small example consistent with the module: batch=2, flat latent of 256.
    x = jax.random.normal(key, (2, 256), dtype=jnp.float32)

    # Reference semantics of view(-1, 256, 1, 1), computed before the call
    # (the kernel may alias/donate its input buffer).
    ref = jnp.reshape(x, (-1, 256, 1, 1))

    y = unsqueeze_forward(x)
    jax.block_until_ready(y)

    assert y.shape == (2, 256, 1, 1), y.shape
    assert y.dtype == x.dtype
    assert jnp.array_equal(y, ref)

    print("KERNEL_OK")
</pallas_src>

<mosaic_0001>
module attributes {stable_mosaic.version = 11 : i64} {
  func.func @_identity_copy_kernel(%arg0: i32, %arg1: memref<2x256xf32, #tpu.memory_space<vmem>>, %arg2: memref<2x256xf32, #tpu.memory_space<vmem>>) attributes {dimension_semantics = [#tpu.dimension_semantics<parallel>], iteration_bounds = array<i64: 1>, scalar_prefetch = 0 : i64, scratch_operands = 0 : i64, tpu.core_type = #tpu.core_type<tc>, window_params = [{transform_indices = @transform_0, window_bounds = array<i64: 2, 256>}, {transform_indices = @transform_1, window_bounds = array<i64: 2, 256>}]} {
    %c0 = arith.constant 0 : index
    %c0_0 = arith.constant 0 : index
    %0 = vector.load %arg1[%c0, %c0_0] : memref<2x256xf32, #tpu.memory_space<vmem>>, vector<2x256xf32>
    %c0_1 = arith.constant 0 : index
    %c0_2 = arith.constant 0 : index
    %1 = vector.load %arg2[%c0_1, %c0_2] : memref<2x256xf32, #tpu.memory_space<vmem>>, vector<2x256xf32>
    tpu.vector_store %arg2[%c0_1, %c0_2], %0 {strides = array<i32>} : memref<2x256xf32, #tpu.memory_space<vmem>>, vector<2x256xf32>,
    return
  }
  func.func @transform_0(%arg0: i32) -> (i32, i32) {
    %c0_i32 = arith.constant 0 : i32
    %c0_i32_0 = arith.constant 0 : i32
    return %arg0, %c0_i32 : i32, i32
  }
  func.func @transform_1(%arg0: i32) -> (i32, i32) {
    %c0_i32 = arith.constant 0 : i32
    %c0_i32_0 = arith.constant 0 : i32
    return %arg0, %c0_i32 : i32, i32
  }
}

</mosaic_0001>

<llo_original>
// kernel: unsqueeze_forward.1
$region0: #{unsqueeze_forward.1}
  #allocation0 [shape = 'u32[]', space=smem, size = 0x4, offset = 0x4, fixed_abs, tag = 'smem constant byte address 0x4 - core index']
  #allocation1 [shape = 'u32[144,128]{1,0:T(1,128)}', space=vmem, size = 0x12000, scoped, tag = 'internal scratch']
  %s0 = inlined_call_operand.vmem [shape: f32[2,256], index: 0, kind: input, shape index: {}, may-alias: {0,1}]
  %s1 = inlined_call_operand.vmem [shape: f32[2,256], index: 1, kind: output, shape index: {}, may-alias: {0,1}]
  %s2 = sld [smem:[#allocation0]]
  $region14: #{unsqueeze_forward.1} parent=0
    _
  %s4 = ssub.s32 1, %s2
  %s5 = scalar_select 0, %s4, %s2
  // Predicated region
  $region2: #{unsqueeze_forward.1} parent=0 // pred_check
    _
  $region3: #{unsqueeze_forward.1} parent=0 // pred_check_branch
    %7 = sbr.rel (0) target = $region5
  $region4: #{unsqueeze_forward.1} parent=0 // pred_region
    _
  $region5: #{unsqueeze_forward.1} parent=0 // pred_fallthru
    _
  %v8 = vld [vmem:[%s0] sm:$0xf]
  %9 = vst [vmem:[%s1] sm:$0xf] %v8
  // Predicated region
  $region6: #{unsqueeze_forward.1} parent=0 // pred_check
    _
  $region7: #{unsqueeze_forward.1} parent=0 // pred_check_branch
    %11 = sbr.rel (0) target = $region9
  $region8: #{unsqueeze_forward.1} parent=0 // pred_region
    _
  $region9: #{unsqueeze_forward.1} parent=0 // pred_fallthru
    _
  // Predicated region
  $region10: #{unsqueeze_forward.1} parent=0 // pred_check
    _
  $region11: #{unsqueeze_forward.1} parent=0 // pred_check_branch
    %13 = sbr.rel (0) target = $region13
  $region12: #{unsqueeze_forward.1} parent=0 // pred_region
    _
  $region13: #{unsqueeze_forward.1} parent=0 // pred_fallthru
    _

</llo_original>
